<compile_context>
chip_gen: v5e
topology: v5e:2x2
jax: 0.10.0
libtpu: 0.0.40
codegen_flags: <defaults>
</compile_context>

<pallas_src>
import functools
import math

import jax
import jax.numpy as jnp
from jax import lax
from jax.experimental import pallas as pl
from jax.experimental.pallas import tpu as pltpu

EPS = 1e-5
_INV_SQRT2 = 1.0 / math.sqrt(2.0)
LANE = 128
SUBLANE = 8


def _round_up(x, m):
    return (x + m - 1) // m * m


def _gelu(x, approx):
    if approx:
        # tanh approximation -> transcendental goes to the (otherwise idle) EUP slot.
        return jax.nn.gelu(x, approximate=True)
    # Exact erf variant (nn.GELU() default).
    return 0.5 * x * (1.0 + lax.erf(x * _INV_SQRT2))


def _bn_scale_shift(s_ref, ss_ref, g_ref, be_ref, inv_n):
    # Folded training-mode BatchNorm: y = x * scale + shift.
    # Stats inputs are (splits*8, mid_p); each split's partial sums live in sublane 0
    # of its 8-row group (rest zero), so a plain axis-0 sum recovers the totals.
    mean = jnp.sum(s_ref[...], axis=0, keepdims=True) * inv_n
    ex2 = jnp.sum(ss_ref[...], axis=0, keepdims=True) * inv_n
    var = jnp.maximum(ex2 - mean * mean, 0.0)
    scale = g_ref[...] * lax.rsqrt(var + EPS)
    shift = be_ref[...] - mean * scale
    return scale, shift


def _acc_stats(h, s_out, ss_out):
    # TODO(synk): when VALU-bound this row reduction could be moved to the MXU
    # (ones(1, tile_n) @ h) at the cost of stats precision in bf16.
    s_out[0:1, :] += jnp.sum(h, axis=0, keepdims=True)
    ss_out[0:1, :] += jnp.sum(h * h, axis=0, keepdims=True)


def _masked_acc_stats(h, s_out, ss_out, *, tile_n, n_real, tiles_per_split, need_mask):
    if not need_mask:                      # static: skip masking entirely
        _acc_stats(h, s_out, ss_out)
        return
    g = pl.program_id(0) * tiles_per_split + pl.program_id(1)   # global tile index
    has_pad = g >= (n_real // tile_n)      # only trailing tiles contain padded rows

    @pl.when(has_pad)
    def _():
        rows = g * tile_n + lax.broadcasted_iota(jnp.int32, (tile_n, 1), 0)
        _acc_stats(jnp.where(rows < n_real, h, 0.0), s_out, ss_out)

    @pl.when(jnp.logical_not(has_pad))
    def _():
        _acc_stats(h, s_out, ss_out)


def _first_block_kernel(x_ref, w_ref, h_ref, s_ref, ss_ref, *, act_dtype):
    @pl.when(pl.program_id(1) == 0)
    def _():
        s_ref[...] = jnp.zeros_like(s_ref)
        ss_ref[...] = jnp.zeros_like(ss_ref)

    # x / w are pre-cast to the MXU dtype on the host; accumulate in f32.
    h = jnp.dot(x_ref[...], w_ref[...], preferred_element_type=jnp.float32)
    h_ref[...] = h.astype(act_dtype)
    # Padded batch rows of x are zero and the hidden bias is dropped (exactly cancelled
    # by the BN batch-mean subtraction), so padded rows of h are exactly zero and need
    # no masking in the statistics.
    _acc_stats(h, s_ref, ss_ref)


def _mid_block_kernel(h_ref, s_in, ss_in, g_ref, be_ref, w_ref,
                      o_ref, s_out, ss_out, scale_sc, shift_sc,
                      *, inv_n, tile_n, n_real, tiles_per_split, need_mask,
                      gelu_approx, act_dtype):
    @pl.when(pl.program_id(1) == 0)
    def _():
        # Fold BN stats into scale/shift once per split instead of once per tile.
        scale, shift = _bn_scale_shift(s_in, ss_in, g_ref, be_ref, inv_n)
        scale_sc[...] = scale
        shift_sc[...] = shift
        s_out[...] = jnp.zeros_like(s_out)
        ss_out[...] = jnp.zeros_like(ss_out)

    a = _gelu(h_ref[...].astype(jnp.float32) * scale_sc[...] + shift_sc[...],
              gelu_approx)
    h = jnp.dot(a.astype(w_ref.dtype), w_ref[...], preferred_element_type=jnp.float32)
    o_ref[...] = h.astype(act_dtype)
    _masked_acc_stats(h, s_out, ss_out, tile_n=tile_n, n_real=n_real,
                      tiles_per_split=tiles_per_split, need_mask=need_mask)


def _last_block_kernel(h_ref, s_in, ss_in, g_ref, be_ref, w_ref, b_ref, o_ref,
                       *, inv_n, gelu_approx):
    # The per-tile (1, mid_p) scale/shift recompute is negligible; this grid is purely
    # "parallel", so a pid==0 scratch fold would be unsafe under megacore sharding.
    scale, shift = _bn_scale_shift(s_in, ss_in, g_ref, be_ref, inv_n)
    a = _gelu(h_ref[...].astype(jnp.float32) * scale + shift, gelu_approx)
    o_ref[...] = (jnp.dot(a.astype(w_ref.dtype), w_ref[...],
                          preferred_element_type=jnp.float32) + b_ref[...])


def _auto_splits():
    # Split-stats only pays off on parts with >1 TensorCore per chip (v7x); it is
    # correct (just redundant) everywhere else.
    try:
        kind = jax.devices()[0].device_kind.lower()
    except Exception:
        return 1
    return 2 if ("v7" in kind or "7x" in kind) else 1


def init_fcn_params(key, in_channels, mid_channels, out_channels):
    """PyTorch-style Linear init (uniform +-1/sqrt(fan_in)); weights stored (in, out)."""
    dims = [(in_channels, mid_channels),
            (mid_channels, mid_channels),
            (mid_channels, mid_channels),
            (mid_channels, out_channels)]
    params = {}
    for li, (fan_in, fan_out) in enumerate(dims, start=1):
        key, kw, kb = jax.random.split(key, 3)
        bound = 1.0 / math.sqrt(fan_in)
        params[f"w{li}"] = jax.random.uniform(
            kw, (fan_in, fan_out), jnp.float32, -bound, bound)
        params[f"b{li}"] = jax.random.uniform(
            kb, (1, fan_out), jnp.float32, -bound, bound)
    for li in (1, 2, 3):
        params[f"g{li}"] = jnp.ones((1, mid_channels), jnp.float32)
        params[f"be{li}"] = jnp.zeros((1, mid_channels), jnp.float32)
    return params


def fcn_forward(x, params, *, mm_dtype=jnp.bfloat16, act_dtype=None,
                tile_n_max=None, stats_splits=None, gelu_approx=False):
    """FCN forward. mm_dtype: MXU operand dtype (bf16 = performance default,
    f32 = bit-faithful validation). act_dtype: storage dtype of the inter-kernel
    activations (defaults to mm_dtype)."""
    if act_dtype is None:
        act_dtype = mm_dtype
    n, in_c = x.shape
    mid_c = params["w1"].shape[1]
    out_c = params["w4"].shape[1]

    # Lane-dense padded feature dims (multiples of 128).
    in_p = _round_up(in_c, LANE)
    mid_p = _round_up(mid_c, LANE)
    out_p = _round_up(out_c, LANE)

    # Batch tiling: big tiles when features are small (amortize ~0.35us/grid step),
    # smaller tiles for wide layers.
    if tile_n_max is None:
        tile_n_max = 2048 if mid_p <= 256 else (512 if mid_p <= 1024 else 256)
    tile_n_max = _round_up(tile_n_max, SUBLANE)
    n8 = _round_up(n, SUBLANE)
    tile_n = min(tile_n_max, n8)

    tiles = pl.cdiv(n, tile_n)
    splits = _auto_splits() if stats_splits is None else int(stats_splits)
    splits = max(1, min(splits, tiles))
    tps = pl.cdiv(tiles, splits)                       # tiles per split
    n_pad = splits * tps * tile_n
    need_mask = (n_pad != n)
    inv_n = 1.0 / float(n)                             # real batch size for statistics

    f32 = jnp.float32
    mm_b = jnp.dtype(mm_dtype).itemsize
    act_b = jnp.dtype(act_dtype).itemsize

    # Host-side padding / pre-casting (lane-dense features, MXU-native dtype).
    xp = jnp.zeros((n_pad, in_p), mm_dtype).at[:n, :in_c].set(x.astype(mm_dtype))

    def pad_w(w, r, c):
        return jnp.zeros((r, c), f32).at[:w.shape[0], :w.shape[1]].set(w).astype(mm_dtype)

    def pad_row(v, c, fill):
        return jnp.full((1, c), fill, f32).at[:, :v.shape[1]].set(v)

    w1 = pad_w(params["w1"], in_p, mid_p)
    w2 = pad_w(params["w2"], mid_p, mid_p)
    w3 = pad_w(params["w3"], mid_p, mid_p)
    w4 = pad_w(params["w4"], mid_p, out_p)
    b4 = pad_row(params["b4"], out_p, 0.0)
    g1, g2, g3 = (pad_row(params[f"g{i}"], mid_p, 1.0) for i in (1, 2, 3))
    be1, be2, be3 = (pad_row(params[f"be{i}"], mid_p, 0.0) for i in (1, 2, 3))

    def tile_spec(c):                                  # (splits, tiles_per_split) grid
        return pl.BlockSpec((tile_n, c), lambda s, t: (s * tps + t, 0))

    def res_spec(r, c):                                # VMEM-resident, constant index
        return pl.BlockSpec((r, c), lambda s, t: (0, 0))

    stat_out_spec = pl.BlockSpec((SUBLANE, mid_p), lambda s, t: (s, 0))
    stat_in_spec = res_spec(splits * SUBLANE, mid_p)
    stat_shape = jax.ShapeDtypeStruct((splits * SUBLANE, mid_p), f32)
    h_shape = jax.ShapeDtypeStruct((n_pad, mid_p), act_dtype)

    # Generation-agnostic VMEM budget derived from actual residency (<= 64 MiB so it
    # is safe on v7x's 64 MiB parts, generous on v5e/v6e 128 MiB).
    w_res = 2 * max(in_p * mid_p, mid_p * mid_p, mid_p * out_p) * mm_b
    act_res = 2 * tile_n * (max(in_p, mid_p) * max(mm_b, act_b)
                            + max(mid_p, out_p) * max(act_b, 4))
    stats_res = 6 * splits * SUBLANE * mid_p * 4
    vmem_limit = int(min(max(2 * (w_res + act_res + stats_res) + (4 << 20),
                             32 << 20), 64 << 20))

    cp_stats = pltpu.CompilerParams(
        dimension_semantics=("parallel", "arbitrary"),
        vmem_limit_bytes=vmem_limit)
    cp_par = pltpu.CompilerParams(
        dimension_semantics=("parallel",),
        vmem_limit_bytes=vmem_limit)

    grid2 = (splits, tps)

    # k1: h1 = x @ W1 ; per-split partial stats of h1.
    h1, s1, ss1 = pl.pallas_call(
        functools.partial(_first_block_kernel, act_dtype=act_dtype),
        grid=grid2,
        in_specs=[tile_spec(in_p), res_spec(in_p, mid_p)],
        out_specs=[tile_spec(mid_p), stat_out_spec, stat_out_spec],
        out_shape=[h_shape, stat_shape, stat_shape],
        compiler_params=cp_stats,
    )(xp, w1)

    # k2 / k3: BN(prev stats) -> GELU -> @ W_next ; per-split partial stats of output.
    def mid_block(h, s, ss, g, be, w):
        return pl.pallas_call(
            functools.partial(_mid_block_kernel, inv_n=inv_n, tile_n=tile_n,
                              n_real=n, tiles_per_split=tps, need_mask=need_mask,
                              gelu_approx=gelu_approx, act_dtype=act_dtype),
            grid=grid2,
            in_specs=[tile_spec(mid_p), stat_in_spec, stat_in_spec,
                      res_spec(1, mid_p), res_spec(1, mid_p),
                      res_spec(mid_p, mid_p)],
            out_specs=[tile_spec(mid_p), stat_out_spec, stat_out_spec],
            out_shape=[h_shape, stat_shape, stat_shape],
            scratch_shapes=[pltpu.VMEM((1, mid_p), f32),
                            pltpu.VMEM((1, mid_p), f32)],
            compiler_params=cp_stats,
        )(h, s, ss, g, be, w)

    h2, s2, ss2 = mid_block(h1, s1, ss1, g1, be1, w2)
    h3, s3, ss3 = mid_block(h2, s2, ss2, g2, be2, w3)

    # k4: BN(stats3) -> GELU -> @ W4 + b4. Lane-dense output, purely parallel grid.
    out = pl.pallas_call(
        functools.partial(_last_block_kernel, inv_n=inv_n, gelu_approx=gelu_approx),
        grid=(splits * tps,),
        in_specs=[pl.BlockSpec((tile_n, mid_p), lambda i: (i, 0)),
                  pl.BlockSpec((splits * SUBLANE, mid_p), lambda i: (0, 0)),
                  pl.BlockSpec((splits * SUBLANE, mid_p), lambda i: (0, 0)),
                  pl.BlockSpec((1, mid_p), lambda i: (0, 0)),
                  pl.BlockSpec((1, mid_p), lambda i: (0, 0)),
                  pl.BlockSpec((mid_p, out_p), lambda i: (0, 0)),
                  pl.BlockSpec((1, out_p), lambda i: (0, 0))],
        out_specs=pl.BlockSpec((tile_n, out_p), lambda i: (i, 0)),
        out_shape=jax.ShapeDtypeStruct((n_pad, out_p), f32),
        compiler_params=cp_par,
    )(h3, s3, ss3, g3, be3, w4, b4)

    return out[:n, :out_c]


def fcn_reference(x, params):
    """Pure-JAX f32 reference faithful to the PyTorch module (hidden biases included)."""
    h = x
    for li in (1, 2, 3):
        h = h @ params[f"w{li}"] + params[f"b{li}"]
        mean = jnp.mean(h, axis=0, keepdims=True)
        var = jnp.mean((h - mean) ** 2, axis=0, keepdims=True)
        h = (h - mean) / jnp.sqrt(var + EPS) * params[f"g{li}"] + params[f"be{li}"]
        h = 0.5 * h * (1.0 + lax.erf(h * _INV_SQRT2))
    return h @ params["w4"] + params["b4"]


if __name__ == "__main__":
    # Small shapes; batch=10 is deliberately not a tile multiple so padded-row masking,
    # the multi-tile grid and the split-stats accumulators are all exercised.
    batch, in_channels, mid_channels, out_channels = 10, 16, 32, 8

    key = jax.random.PRNGKey(0)
    key, kx = jax.random.split(key)
    x = jax.random.normal(kx, (batch, in_channels), jnp.float32)
    params = init_fcn_params(key, in_channels, mid_channels, out_channels)

    ref = fcn_reference(x, params)

    # f32 validation path (bit-faithful): tiny tiles + 2 stat splits.
    out_f32 = jax.block_until_ready(
        fcn_forward(x, params, mm_dtype=jnp.float32, tile_n_max=8, stats_splits=2))
    assert out_f32.shape == (batch, out_channels)
    assert jnp.allclose(out_f32, ref, atol=1e-4, rtol=1e-4), "f32 path mismatch"

    # bf16 performance default (MXU-native operands + bf16 inter-kernel activations).
    # Loose tolerance: bf16 rounding is amplified through three batch-norms.
    out_bf16 = jax.block_until_ready(fcn_forward(x, params))
    assert out_bf16.shape == (batch, out_channels)
    assert jnp.allclose(out_bf16, ref, atol=1.5e-1, rtol=1e-1), "bf16 path mismatch"

    print("KERNEL_OK")
</pallas_src>

<mosaic_0001>
module attributes {stable_mosaic.version = 11 : i64} {
  func.func @_first_block_kernel(%arg0: i32, %arg1: i32, %arg2: memref<8x128xf32, #tpu.memory_space<vmem>>, %arg3: memref<128x128xf32, #tpu.memory_space<vmem>>, %arg4: memref<8x128xf32, #tpu.memory_space<vmem>>, %arg5: memref<8x128xf32, #tpu.memory_space<vmem>>, %arg6: memref<8x128xf32, #tpu.memory_space<vmem>>) attributes {dimension_semantics = [#tpu.dimension_semantics<parallel>, #tpu.dimension_semantics<arbitrary>], iteration_bounds = array<i64: 2, 1>, scalar_prefetch = 0 : i64, scratch_operands = 0 : i64, tpu.core_type = #tpu.core_type<tc>, window_params = [{transform_indices = @transform_0, window_bounds = array<i64: 8, 128>}, {pipeline_mode = #tpu.pipeline_mode<synchronous>, transform_indices = @transform_1, window_bounds = array<i64: 128, 128>}, {transform_indices = @transform_2, window_bounds = array<i64: 8, 128>}, {transform_indices = @transform_3, window_bounds = array<i64: 8, 128>}, {transform_indices = @transform_4, window_bounds = array<i64: 8, 128>}]} {
    %c0_i32 = arith.constant 0 : i32
    %0 = arith.cmpi eq, %arg1, %c0_i32 : i32
    %1 = arith.extui %0 : i1 to i32
    %c0_i32_0 = arith.constant 0 : i32
    %2 = arith.cmpi ne, %1, %c0_i32_0 : i32
    scf.if %2 {
      %cst_16 = arith.constant 0.000000e+00 : f32
      %18 = vector.broadcast %cst_16 : f32 to vector<8x128xf32>
      %c0_17 = arith.constant 0 : index
      %c0_18 = arith.constant 0 : index
      %19 = vector.load %arg5[%c0_17, %c0_18] : memref<8x128xf32, #tpu.memory_space<vmem>>, vector<8x128xf32>
      tpu.vector_store %arg5[%c0_17, %c0_18], %18 {strides = array<i32>} : memref<8x128xf32, #tpu.memory_space<vmem>>, vector<8x128xf32>,
      %cst_19 = arith.constant 0.000000e+00 : f32
      %20 = vector.broadcast %cst_19 : f32 to vector<8x128xf32>
      %c0_20 = arith.constant 0 : index
      %c0_21 = arith.constant 0 : index
      %21 = vector.load %arg6[%c0_20, %c0_21] : memref<8x128xf32, #tpu.memory_space<vmem>>, vector<8x128xf32>
      tpu.vector_store %arg6[%c0_20, %c0_21], %20 {strides = array<i32>} : memref<8x128xf32, #tpu.memory_space<vmem>>, vector<8x128xf32>,
    } else {
    }
    %c0 = arith.constant 0 : index
    %c0_1 = arith.constant 0 : index
    %3 = vector.load %arg2[%c0, %c0_1] : memref<8x128xf32, #tpu.memory_space<vmem>>, vector<8x128xf32>
    %c0_2 = arith.constant 0 : index
    %c0_3 = arith.constant 0 : index
    %4 = vector.load %arg3[%c0_2, %c0_3] : memref<128x128xf32, #tpu.memory_space<vmem>>, vector<128x128xf32>
    %cst = arith.constant dense<0.000000e+00> : vector<8x128xf32>
    %5 = tpu.matmul %3, %4, %cst {dimension_numbers = #tpu.dot_dimension_numbers<[1], [0], [0], [1], [0, 0, 1, 1], [], []>} : vector<8x128xf32>, vector<128x128xf32>, vector<8x128xf32> -> vector<8x128xf32>
    %c0_4 = arith.constant 0 : index
    %c0_5 = arith.constant 0 : index
    %6 = vector.load %arg4[%c0_4, %c0_5] : memref<8x128xf32, #tpu.memory_space<vmem>>, vector<8x128xf32>
    tpu.vector_store %arg4[%c0_4, %c0_5], %5 {strides = array<i32>} : memref<8x128xf32, #tpu.memory_space<vmem>>, vector<8x128xf32>,
    %c0_6 = arith.constant 0 : index
    %c0_7 = arith.constant 0 : index
    %7 = vector.load %arg5[%c0_6, %c0_7] : memref<8x128xf32, #tpu.memory_space<vmem>>, vector<1x128xf32>
    %cst_8 = arith.constant dense<0.000000e+00> : vector<128xf32>
    %8 = vector.multi_reduction <add>, %5, %cst_8 [0] : vector<8x128xf32> to vector<128xf32>
    %9 = vector.shape_cast %8 : vector<128xf32> to vector<1x128xf32>
    %10 = arith.addf %7, %9 : vector<1x128xf32>
    %c0_9 = arith.constant 0 : index
    %c0_10 = arith.constant 0 : index
    %11 = vector.load %arg5[%c0_9, %c0_10] : memref<8x128xf32, #tpu.memory_space<vmem>>, vector<1x128xf32>
    tpu.vector_store %arg5[%c0_9, %c0_10], %10 {strides = array<i32>} : memref<8x128xf32, #tpu.memory_space<vmem>>, vector<1x128xf32>,
    %c0_11 = arith.constant 0 : index
    %c0_12 = arith.constant 0 : index
    %12 = vector.load %arg6[%c0_11, %c0_12] : memref<8x128xf32, #tpu.memory_space<vmem>>, vector<1x128xf32>
    %13 = arith.mulf %5, %5 : vector<8x128xf32>
    %cst_13 = arith.constant dense<0.000000e+00> : vector<128xf32>
    %14 = vector.multi_reduction <add>, %13, %cst_13 [0] : vector<8x128xf32> to vector<128xf32>
    %15 = vector.shape_cast %14 : vector<128xf32> to vector<1x128xf32>
    %16 = arith.addf %12, %15 : vector<1x128xf32>
    %c0_14 = arith.constant 0 : index
    %c0_15 = arith.constant 0 : index
    %17 = vector.load %arg6[%c0_14, %c0_15] : memref<8x128xf32, #tpu.memory_space<vmem>>, vector<1x128xf32>
    tpu.vector_store %arg6[%c0_14, %c0_15], %16 {strides = array<i32>} : memref<8x128xf32, #tpu.memory_space<vmem>>, vector<1x128xf32>,
    return
  }
  func.func @transform_0(%arg0: i32, %arg1: i32) -> (i32, i32) {
    %c1_i32 = arith.constant 1 : i32
    %0 = arith.muli %arg0, %c1_i32 : i32
    %1 = arith.addi %0, %arg1 : i32
    %c0_i32 = arith.constant 0 : i32
    %c0_i32_0 = arith.constant 0 : i32
    return %1, %c0_i32 : i32, i32
  }
  func.func @transform_1(%arg0: i32, %arg1: i32) -> (i32, i32) {
    %c0_i32 = arith.constant 0 : i32
    %c0_i32_0 = arith.constant 0 : i32
    %c0_i32_1 = arith.constant 0 : i32
    return %c0_i32, %c0_i32_0 : i32, i32
  }
  func.func @transform_2(%arg0: i32, %arg1: i32) -> (i32, i32) {
    %c1_i32 = arith.constant 1 : i32
    %0 = arith.muli %arg0, %c1_i32 : i32
    %1 = arith.addi %0, %arg1 : i32
    %c0_i32 = arith.constant 0 : i32
    %c0_i32_0 = arith.constant 0 : i32
    return %1, %c0_i32 : i32, i32
  }
  func.func @transform_3(%arg0: i32, %arg1: i32) -> (i32, i32) {
    %c0_i32 = arith.constant 0 : i32
    %c0_i32_0 = arith.constant 0 : i32
    return %arg0, %c0_i32 : i32, i32
  }
  func.func @transform_4(%arg0: i32, %arg1: i32) -> (i32, i32) {
    %c0_i32 = arith.constant 0 : i32
    %c0_i32_0 = arith.constant 0 : i32
    return %arg0, %c0_i32 : i32, i32
  }
}

</mosaic_0001>

<llo_original>
// kernel: tpu_custom_call.1
$region0: #{tpu_custom_call.1}
  #allocation0 [shape = 'u32[]', space=smem, size = 0x4, offset = 0x4, fixed_abs, tag = 'smem constant byte address 0x4 - core index']
  #allocation1 [shape = 'u32[72,128]{1,0:T(1,128)}', space=vmem, size = 0x9000, scoped, tag = 'internal scratch']
  %s0 = inlined_call_operand.hbm [shape: f32[16,128], index: 0, kind: input, shape index: {}]
  %s1 = inlined_call_operand.hbm [shape: f32[128,128], index: 1, kind: input, shape index: {}]
  %s2 = inlined_call_operand.hbm [shape: f32[16,128], index: 2, kind: output, shape index: {0}]
  %s3 = inlined_call_operand.hbm [shape: f32[16,128], index: 3, kind: output, shape index: {1}]
  %s4 = inlined_call_operand.hbm [shape: f32[16,128], index: 4, kind: output, shape index: {2}]
  %5 = xla_tuple %s2, %s3, %s4
  %s6 = sld [smem:[#allocation0]]
  $region69: #{tpu_custom_call.1} parent=0
    _
  %s8 = ssub.s32 1, %s6
  %s9 = scalar_select 0, %s8, %s6
  $region1: #{tpu_custom_call.1} parent=0
    #allocation2 [shape = 'u8[8192]{0}', space=vmem, size = 0x2000, scoped, tag = 'input window, operand 0']
    #allocation3 [shape = 's32[2]{0}', space=sflag, size = 0x8, scoped, tag = 'scoped memory for tpu_custom_call.1']
    #allocation4 [shape = 's32[2]{0}', space=sflag, size = 0x8, scoped, tag = 'scoped memory for tpu_custom_call.1']
    #allocation5 [shape = 'u8[65536]{0}', space=vmem, size = 0x10000, scoped, tag = 'input window, operand 1, single buffered']
    #allocation6 [shape = 's32[1]{0}', space=sflag, size = 0x4, scoped, tag = 'scoped memory for tpu_custom_call.1']
    #allocation7 [shape = 'u8[8192]{0}', space=vmem, size = 0x2000, scoped, tag = 'output window, operand 0']
    #allocation8 [shape = 'u8[8192]{0}', space=vmem, size = 0x2000, scoped, tag = 'output window, operand 1']
    #allocation9 [shape = 's32[2]{0}', space=sflag, size = 0x8, scoped, tag = 'scoped memory for tpu_custom_call.1']
    #allocation10 [shape = 'u8[8192]{0}', space=vmem, size = 0x2000, scoped, tag = 'output window, operand 2']
    %10 = vsyncpa [#allocation3], 0
    %s11 = scalar_lea.sflag [#allocation3], 1
    %12 = vsyncpa %s11, 0
    %13 = vsyncpa [#allocation6], 0
    %14 = vsyncpa [#allocation4], 0
    %s15 = scalar_lea.sflag [#allocation4], 1
    %16 = vsyncpa %s15, 0
    %17 = vsyncpa [#allocation9], 0
    %s18 = scalar_lea.sflag [#allocation9], 1
    %19 = vsyncpa %s18, 0
    loop: start=0, step=1, limit=4
    $region2: #{tpu_custom_call.1} parent=1 // loop_pre_header
      _
    $region3: #{tpu_custom_call.1} parent=1 // loop_header
      %s21 = sphi 0, %s25
      %p22 = scmp.ge.s32.totalorder %s21, 4
      %s28 = sphi 0, %s40
      %s29 = sphi 0, %s36
      %s30 = sphi 0, %s28
      %s31 = sphi 0, %s29
      %s32 = sphi 0, %s30
      %s33 = sphi 0, %s31
      %s45 = sphi 0, %s47
      %s48 = sphi 0, %s45
      %s49 = sphi 0, %s48
      %s65 = sphi 0, %s49
      %s69 = sphi 0, %s69
      %s71 = sphi 0, %s69
      %s72 = sphi 0, %s71
      %s86 = sphi 0, %s72
      %s94 = sphi 0, %s96
      %s97 = sphi 0, %s94
      %s98 = sphi 0, %s97
      %s114 = sphi 0, %s98
      %s120 = sphi 0, %s122
      %s123 = sphi 0, %s120
      %s124 = sphi 0, %s123
      %s140 = sphi 0, %s124
      %s146 = sphi 0, %s148
      %s149 = sphi 0, %s146
      %s150 = sphi 0, %s149
      %s166 = sphi 0, %s150
    $region4: #{tpu_custom_call.1} parent=1 // loop_header_branch
      %24 = sbr.rel (%p22) target = $region8
    $region5: #{tpu_custom_call.1} parent=1 // loop_body
      %s26 = ssub.s32 %s21, 1
      %s27 = ssub.s32 %s21, 2
      %s34 = sadd.s32 1, %s29
      %p35 = scmp.ge.s32.totalorder %s34, 1
      %s36 = scalar_select %p35, 0, %s34
      %s37 = sadd.s32 1, %s28
      %s38 = scalar_select %p35, %s37, %s28
      %p39 = scmp.ge.s32.totalorder %s38, 2
      %s40 = scalar_select %p39, 0, %s38
      %s41 = sadd.s32 %s28, %s29
      %s42 = sadd.s32 %s40, %s36
      %s43 = ssub.s32 %s41, %s42
      %p44 = scmp.eq.s32.totalorder %s43, 0
      %s46 = sadd.s32 %s45, 1
      %s47 = scalar_select %p44, %s45, %s46
      %p50 = pneg %p44
      %p51 = scmp.eq.s32.totalorder %s21, 1
      %p52 = por %p50, %p51
      %p53 = scmp.ne.s32.totalorder %s45, %s48
      %p54 = scmp.eq.s32.totalorder %s21, 0
      %p55 = por %p53, %p54
      %p56 = scmp.ne.s32.totalorder %s45, %s48
      %p57 = scmp.eq.s32.totalorder %s26, 1
      %p58 = por %p56, %p57
      %p59 = scmp.ne.s32.totalorder %s48, %s49
      %p60 = scmp.eq.s32.totalorder %s26, 0
      %p61 = por %p59, %p60
      %p62 = scmp.ne.s32.totalorder %s48, %s49
      %p63 = scmp.eq.s32.totalorder %s27, 1
      %p64 = por %p62, %p63
      %p66 = scmp.ne.s32.totalorder %s49, %s65
      %p67 = scmp.eq.s32.totalorder %s27, 0
      %p68 = por %p66, %p67
      %s70 = sadd.s32 %s69, 1
      %p73 = scmp.eq.s32.totalorder %s21, 1
      %p74 = scmp.ne.s32.totalorder %s69, %s71
      %p75 = scmp.eq.s32.totalorder %s21, 0
      %p76 = por %p74, %p75
      %p77 = scmp.ne.s32.totalorder %s69, %s71
      %p78 = scmp.eq.s32.totalorder %s26, 1
      %p79 = por %p77, %p78
      %p80 = scmp.ne.s32.totalorder %s71, %s72
      %p81 = scmp.eq.s32.totalorder %s26, 0
      %p82 = por %p80, %p81
      %p83 = scmp.ne.s32.totalorder %s71, %s72
      %p84 = scmp.eq.s32.totalorder %s27, 1
      %p85 = por %p83, %p84
      %p87 = scmp.ne.s32.totalorder %s72, %s86
      %p88 = scmp.eq.s32.totalorder %s27, 0
      %p89 = por %p87, %p88
      %s90 = sadd.s32 %s28, %s29
      %s91 = sadd.s32 %s40, %s36
      %s92 = ssub.s32 %s90, %s91
      %p93 = scmp.eq.s32.totalorder %s92, 0
      %s95 = sadd.s32 %s94, 1
      %s96 = scalar_select %p93, %s94, %s95
      %p99 = pneg %p93
      %p100 = scmp.eq.s32.totalorder %s21, 1
      %p101 = por %p99, %p100
      %p102 = scmp.ne.s32.totalorder %s94, %s97
      %p103 = scmp.eq.s32.totalorder %s21, 0
      %p104 = por %p102, %p103
      %p105 = scmp.ne.s32.totalorder %s94, %s97
      %p106 = scmp.eq.s32.totalorder %s26, 1
      %p107 = por %p105, %p106
      %p108 = scmp.ne.s32.totalorder %s97, %s98
      %p109 = scmp.eq.s32.totalorder %s26, 0
      %p110 = por %p108, %p109
      %p111 = scmp.ne.s32.totalorder %s97, %s98
      %p112 = scmp.eq.s32.totalorder %s27, 1
      %p113 = por %p111, %p112
      %p115 = scmp.ne.s32.totalorder %s98, %s114
      %p116 = scmp.eq.s32.totalorder %s27, 0
      %p117 = por %p115, %p116
      %s118 = ssub.s32 %s28, %s40
      %p119 = scmp.eq.s32.totalorder %s118, 0
      %s121 = sadd.s32 %s120, 1
      %s122 = scalar_select %p119, %s120, %s121
      %p125 = pneg %p119
      %p126 = scmp.eq.s32.totalorder %s21, 1
      %p127 = por %p125, %p126
      %p128 = scmp.ne.s32.totalorder %s120, %s123
      %p129 = scmp.eq.s32.totalorder %s21, 0
      %p130 = por %p128, %p129
      %p131 = scmp.ne.s32.totalorder %s120, %s123
      %p132 = scmp.eq.s32.totalorder %s26, 1
      %p133 = por %p131, %p132
      %p134 = scmp.ne.s32.totalorder %s123, %s124
      %p135 = scmp.eq.s32.totalorder %s26, 0
      %p136 = por %p134, %p135
      %p137 = scmp.ne.s32.totalorder %s123, %s124
      %p138 = scmp.eq.s32.totalorder %s27, 1
      %p139 = por %p137, %p138
      %p141 = scmp.ne.s32.totalorder %s124, %s140
      %p142 = scmp.eq.s32.totalorder %s27, 0
      %p143 = por %p141, %p142
      %s144 = ssub.s32 %s28, %s40
      %p145 = scmp.eq.s32.totalorder %s144, 0
      %s147 = sadd.s32 %s146, 1
      %s148 = scalar_select %p145, %s146, %s147
      %p151 = pneg %p145
      %p152 = scmp.eq.s32.totalorder %s21, 1
      %p153 = por %p151, %p152
      %p154 = scmp.ne.s32.totalorder %s146, %s149
      %p155 = scmp.eq.s32.totalorder %s21, 0
      %p156 = por %p154, %p155
      %p157 = scmp.ne.s32.totalorder %s146, %s149
      %p158 = scmp.eq.s32.totalorder %s26, 1
      %p159 = por %p157, %p158
      %p160 = scmp.ne.s32.totalorder %s149, %s150
      %p161 = scmp.eq.s32.totalorder %s26, 0
      %p162 = por %p160, %p161
      %p163 = scmp.ne.s32.totalorder %s149, %s150
      %p164 = scmp.eq.s32.totalorder %s27, 1
      %p165 = por %p163, %p164
      %p167 = scmp.ne.s32.totalorder %s150, %s166
      %p168 = scmp.eq.s32.totalorder %s27, 0
      %p169 = por %p167, %p168
      %p170 = scmp.le.s32.totalorder 1, %s21
      %p171 = scmp.lt.s32.totalorder %s21, 3
      %p172 = pnand %p170, %p171
      %p173 = pneg %p172
      // Predicated region
      $region9: #{tpu_custom_call.1} parent=5 // pred_check
        _
      $region10: #{tpu_custom_call.1} parent=5 // pred_check_branch
        %175 = sbr.rel (%p172) target = $region12
      $region11: #{tpu_custom_call.1} parent=5 // pred_region
        %s176 = ssub.s32 %s21, 1
        // Predicated region
        $region13: #{tpu_custom_call.1} parent=11 // pred_check
          %p177 = pneg %p82
        $region14: #{tpu_custom_call.1} parent=11 // pred_check_branch
          %179 = sbr.rel (%p177) target = $region16
        $region15: #{tpu_custom_call.1} parent=11 // pred_region
          %181 = vsyncadd [#allocation6], 0
          %s182 = sshll.u32 %s1, 4
          %s183 = int_to_ptr.hbm [resolvable:$true] %s182
          %s184 = sshll.u32 [#allocation5], 4
          %s185 = int_to_ptr.vmem [resolvable:$true] %s184
          %190 = dma.hbm_to_vmem [thread:$0]  %s183, 2048, %s185, [#allocation6], 128, 128, 8
        $region16: #{tpu_custom_call.1} parent=11 // pred_fallthru
          _
      $region12: #{tpu_custom_call.1} parent=5 // pred_fallthru
        _
      %p191 = scmp.lt.s32.totalorder %s21, 2
      // Predicated region
      $region17: #{tpu_custom_call.1} parent=5 // pred_check
        %p192 = pneg %p191
      $region18: #{tpu_custom_call.1} parent=5 // pred_check_branch
        %194 = sbr.rel (%p192) target = $region20
      $region19: #{tpu_custom_call.1} parent=5 // pred_region
        // Predicated region
        $region21: #{tpu_custom_call.1} parent=19 // pred_check
          %p195 = pneg %p55
        $region22: #{tpu_custom_call.1} parent=19 // pred_check_branch
          %197 = sbr.rel (%p195) target = $region24
        $region23: #{tpu_custom_call.1} parent=19 // pred_region
          %s198 = sand.u32 %s45, 1
          %s199 = scalar_lea.sflag [#allocation3], %s198
          %s200 = sand.u32 %s45, 1
          %s201 = smul.addr %s200, 8
          %s202 = scalar_lea.vmem [#allocation2], %s201
          %s203 = sadd.s32 %s28, %s29
          %205 = vsyncadd %s199, 0
          %s206 = smul.addr %s203, 8
          %s207 = scalar_lea.hbm %s0, %s206
          %s209 = sshll.u32 %s207, 4
          %s210 = int_to_ptr.hbm [resolvable:$true] %s209
          %s211 = sshll.u32 %s202, 4
          %s212 = int_to_ptr.vmem [resolvable:$true] %s211
          %214 = dma.hbm_to_vmem [thread:$0]  %s210, 128, %s212, %s199
        $region24: #{tpu_custom_call.1} parent=19 // pred_fallthru
          _
      $region20: #{tpu_custom_call.1} parent=5 // pred_fallthru
        _
      %p215 = scmp.le.s32.totalorder 1, %s21
      %p216 = scmp.lt.s32.totalorder %s21, 3
      %p217 = pnand %p215, %p216
      %p218 = pneg %p217
      // Predicated region
      $region25: #{tpu_custom_call.1} parent=5 // pred_check
        _
      $region26: #{tpu_custom_call.1} parent=5 // pred_check_branch
        %220 = sbr.rel (%p217) target = $region28
      $region27: #{tpu_custom_call.1} parent=5 // pred_region
        %s221 = ssub.s32 %s21, 1
        %s222 = sand.u32 %s48, 1
        %s223 = scalar_lea.sflag [#allocation3], %s222
        %s224 = sand.u32 %s48, 1
        %s225 = smul.addr %s224, 8
        %s226 = scalar_lea.vmem [#allocation2], %s225
        // Predicated region
        $region29: #{tpu_custom_call.1} parent=27 // pred_check
          %p227 = pneg %p61
        $region30: #{tpu_custom_call.1} parent=27 // pred_check_branch
          %229 = sbr.rel (%p227) target = $region32
        $region31: #{tpu_custom_call.1} parent=27 // pred_region
          %231 = dma.done %s223, 128
        $region32: #{tpu_custom_call.1} parent=27 // pred_fallthru
          _
        // Predicated region
        $region33: #{tpu_custom_call.1} parent=27 // pred_check
          %p232 = pneg %p82
        $region34: #{tpu_custom_call.1} parent=27 // pred_check_branch
          %234 = sbr.rel (%p232) target = $region36
        $region35: #{tpu_custom_call.1} parent=27 // pred_region
          %236 = dma.done [#allocation6], 2048
        $region36: #{tpu_custom_call.1} parent=27 // pred_fallthru
          _
        %s237 = sand.u32 %s48, 1
        %s238 = scalar_lea.sflag [#allocation3], %s237
        %s239 = sand.u32 %s48, 1
        %s240 = smul.addr %s239, 8
        %s241 = scalar_lea.vmem [#allocation2], %s240
        %p242 = pneg %p61
        %p243 = pneg %p58
        %p244 = pneg %p82
        %p245 = pneg %p79
        %p246 = pneg %p110
        %p247 = pneg %p107
        %s248 = sand.u32 %s97, 1
        %s249 = scalar_lea.sflag [#allocation4], %s248
        %s250 = sand.u32 %s97, 1
        %s251 = smul.addr %s250, 8
        %s252 = scalar_lea.vmem [#allocation7], %s251
        %p253 = pneg %p136
        %p254 = pneg %p133
        %s255 = sand.u32 %s26, 1
        %s256 = scalar_lea.sflag [#allocation9], %s255
        %s257 = sand.u32 %s123, 1
        %s258 = smul.addr %s257, 8
        %s259 = scalar_lea.vmem [#allocation8], %s258
        %p260 = pneg %p162
        %p261 = pneg %p159
        %s262 = sand.u32 %s26, 1
        %s263 = scalar_lea.sflag [#allocation9], %s262
        %s264 = sand.u32 %s149, 1
        %s265 = smul.addr %s264, 8
        %s266 = scalar_lea.vmem [#allocation10], %s265
        %s267 = sadd.s32 %s30, %s31
        %s268 = sadd.s32 %s30, %s31
        %p269 = scmp.eq.s32.totalorder %s31, 0
        // Predicated region
        $region37: #{tpu_custom_call.1} parent=27 // pred_check
          %p270 = pneg %p269
        $region38: #{tpu_custom_call.1} parent=27 // pred_check_branch
          %272 = sbr.rel (%p270) target = $region40
        $region39: #{tpu_custom_call.1} parent=27 // pred_region
          %273 = vst [vmem:[%s259] sm:$0xff] 0.0
          %274 = vst [vmem:[%s266] sm:$0xff] 0.0
        $region40: #{tpu_custom_call.1} parent=27 // pred_fallthru
          _
        %v275 = vld [vmem:[%s226] sm:$0xff]
        %v276 = vld [vmem:[#allocation5] sm:$0xff]
        %v277 = vld [vmem:[#allocation5 + $0x8] sm:$0xff]
        %v278 = vld [vmem:[#allocation5 + $0x10] sm:$0xff]
        %v279 = vld [vmem:[#allocation5 + $0x18] sm:$0xff]
        %v280 = vld [vmem:[#allocation5 + $0x20] sm:$0xff]
        %v281 = vld [vmem:[#allocation5 + $0x28] sm:$0xff]
        %v282 = vld [vmem:[#allocation5 + $0x30] sm:$0xff]
        %v283 = vld [vmem:[#allocation5 + $0x38] sm:$0xff]
        %v284 = vld [vmem:[#allocation5 + $0x40] sm:$0xff]
        %v285 = vld [vmem:[#allocation5 + $0x48] sm:$0xff]
        %v286 = vld [vmem:[#allocation5 + $0x50] sm:$0xff]
        %v287 = vld [vmem:[#allocation5 + $0x58] sm:$0xff]
        %v288 = vld [vmem:[#allocation5 + $0x60] sm:$0xff]
        %v289 = vld [vmem:[#allocation5 + $0x68] sm:$0xff]
        %v290 = vld [vmem:[#allocation5 + $0x70] sm:$0xff]
        %v291 = vld [vmem:[#allocation5 + $0x78] sm:$0xff]
        %292 = vmatpush.msra.mxu0 %v291
        %293 = vmatpush.msra.mxu0 %v290
        %294 = vmatpush.msra.mxu0 %v289
        %295 = vmatpush.msra.mxu0 %v288
        %296 = vmatpush.msra.mxu0 %v287
        %297 = vmatpush.msra.mxu0 %v286
        %298 = vmatpush.msra.mxu0 %v285
        %299 = vmatpush.msra.mxu0 %v284
        %300 = vmatpush.msra.mxu0 %v283
        %301 = vmatpush.msra.mxu0 %v282
        %302 = vmatpush.msra.mxu0 %v281
        %303 = vmatpush.msra.mxu0 %v280
        %304 = vmatpush.msra.mxu0 %v279
        %305 = vmatpush.msra.mxu0 %v278
        %306 = vmatpush.msra.mxu0 %v277
        %307 = vmatpush.msra.mxu0 %v276
        %308 = vmatmul.f32.gmra.mxu0 %v275
        %v309 = vpop.f32.mrf.mxu0
        %v310 = vadd.f32 0.0, %v309
        %311 = vdwg.mxu0
        %312 = vst [vmem:[%s252] sm:$0xff] %v310
        %v313 = vld [vmem:[%s259] sm:$0x1]
        %v314 = vrot.slane %v310, 4
        %v315 = vadd.f32 %v310, %v314
        %v316 = vrot.slane %v315, 2
        %v317 = vadd.f32 %v315, %v316
        %v318 = vrot.slane %v317, 1
        %v319 = vadd.f32 %v317, %v318
        %v320 = vadd.f32 %v313, %v319
        %321 = vst [vmem:[%s259] sm:$0x1] %v320
        %v322 = vld [vmem:[%s266] sm:$0x1]
        %v323 = vmul.f32 %v310, %v310
        %v324 = vrot.slane %v323, 4
        %v325 = vadd.f32 %v323, %v324
        %v326 = vrot.slane %v325, 2
        %v327 = vadd.f32 %v325, %v326
        %v328 = vrot.slane %v327, 1
        %v329 = vadd.f32 %v327, %v328
        %v330 = vadd.f32 %v322, %v329
        %331 = vst [vmem:[%s266] sm:$0x1] %v330
        %s332 = sand.u32 %s97, 1
        %s333 = scalar_lea.sflag [#allocation4], %s332
        %s334 = sand.u32 %s97, 1
        %s335 = smul.addr %s334, 8
        %s336 = scalar_lea.vmem [#allocation7], %s335
        %s337 = sand.u32 %s26, 1
        %s338 = scalar_lea.sflag [#allocation9], %s337
        %s339 = sand.u32 %s123, 1
        %s340 = smul.addr %s339, 8
        %s341 = scalar_lea.vmem [#allocation8], %s340
        %s342 = sand.u32 %s26, 1
        %s343 = scalar_lea.sflag [#allocation9], %s342
        %s344 = sand.u32 %s149, 1
        %s345 = smul.addr %s344, 8
        %s346 = scalar_lea.vmem [#allocation10], %s345
        // Predicated region
        $region41: #{tpu_custom_call.1} parent=27 // pred_check
          %p347 = pneg %p107
        $region42: #{tpu_custom_call.1} parent=27 // pred_check_branch
          %349 = sbr.rel (%p347) target = $region44
        $region43: #{tpu_custom_call.1} parent=27 // pred_region
          %s350 = sadd.s32 %s30, %s31
          %352 = vsyncadd %s333, 0
          %s353 = smul.addr %s350, 8
          %s354 = scalar_lea.hbm %s2, %s353
          %s356 = sshll.u32 %s336, 4
          %s357 = int_to_ptr.vmem [resolvable:$true] %s356
          %s358 = sshll.u32 %s354, 4
          %s359 = int_to_ptr.hbm [resolvable:$true] %s358
          %361 = dma.vmem_to_hbm [thread:$0]  %s357, 128, %s359, %s333
        $region44: #{tpu_custom_call.1} parent=27 // pred_fallthru
          _
        // Predicated region
        $region45: #{tpu_custom_call.1} parent=27 // pred_check
          %p362 = pneg %p133
        $region46: #{tpu_custom_call.1} parent=27 // pred_check_branch
          %364 = sbr.rel (%p362) target = $region48
        $region47: #{tpu_custom_call.1} parent=27 // pred_region
          %366 = vsyncadd %s338, 0
          %s367 = smul.addr %s30, 8
          %s368 = scalar_lea.hbm %s3, %s367
          %s370 = sshll.u32 %s341, 4
          %s371 = int_to_ptr.vmem [resolvable:$true] %s370
          %s372 = sshll.u32 %s368, 4
          %s373 = int_to_ptr.hbm [resolvable:$true] %s372
          %375 = dma.vmem_to_hbm [thread:$0]  %s371, 128, %s373, %s338
        $region48: #{tpu_custom_call.1} parent=27 // pred_fallthru
          _
        // Predicated region
        $region49: #{tpu_custom_call.1} parent=27 // pred_check
          %p376 = pneg %p159
        $region50: #{tpu_custom_call.1} parent=27 // pred_check_branch
          %378 = sbr.rel (%p376) target = $region52
        $region51: #{tpu_custom_call.1} parent=27 // pred_region
          %380 = vsyncadd %s343, 0
          %s381 = smul.addr %s30, 8
          %s382 = scalar_lea.hbm %s4, %s381
          %s384 = sshll.u32 %s346, 4
          %s385 = int_to_ptr.vmem [resolvable:$true] %s384
          %s386 = sshll.u32 %s382, 4
          %s387 = int_to_ptr.hbm [resolvable:$true] %s386
          %389 = dma.vmem_to_hbm [thread:$0]  %s385, 128, %s387, %s343
        $region52: #{tpu_custom_call.1} parent=27 // pred_fallthru
          _
      $region28: #{tpu_custom_call.1} parent=5 // pred_fallthru
        _
      %p390 = scmp.le.s32.totalorder 2, %s21
      // Predicated region
      $region53: #{tpu_custom_call.1} parent=5 // pred_check
        %p391 = pneg %p390
      $region54: #{tpu_custom_call.1} parent=5 // pred_check_branch
        %393 = sbr.rel (%p391) target = $region56
      $region55: #{tpu_custom_call.1} parent=5 // pred_region
        %s394 = ssub.s32 %s21, 2
        // Predicated region
        $region57: #{tpu_custom_call.1} parent=55 // pred_check
          %p395 = pneg %p113
        $region58: #{tpu_custom_call.1} parent=55 // pred_check_branch
          %397 = sbr.rel (%p395) target = $region60
        $region59: #{tpu_custom_call.1} parent=55 // pred_region
          %s398 = sand.u32 %s98, 1
          %s399 = scalar_lea.sflag [#allocation4], %s398
          %s400 = sand.u32 %s98, 1
          %s401 = smul.addr %s400, 8
          %s402 = scalar_lea.vmem [#allocation7], %s401
          %404 = dma.done %s399, 128
        $region60: #{tpu_custom_call.1} parent=55 // pred_fallthru
          _
        // Predicated region
        $region61: #{tpu_custom_call.1} parent=55 // pred_check
          %p405 = pneg %p139
        $region62: #{tpu_custom_call.1} parent=55 // pred_check_branch
          %407 = sbr.rel (%p405) target = $region64
        $region63: #{tpu_custom_call.1} parent=55 // pred_region
          %s408 = sand.u32 %s27, 1
          %s409 = scalar_lea.sflag [#allocation9], %s408
          %s410 = sand.u32 %s124, 1
          %s411 = smul.addr %s410, 8
          %s412 = scalar_lea.vmem [#allocation8], %s411
          %414 = dma.done %s409, 128
        $region64: #{tpu_custom_call.1} parent=55 // pred_fallthru
          _
        // Predicated region
        $region65: #{tpu_custom_call.1} parent=55 // pred_check
          %p415 = pneg %p165
        $region66: #{tpu_custom_call.1} parent=55 // pred_check_branch
          %417 = sbr.rel (%p415) target = $region68
        $region67: #{tpu_custom_call.1} parent=55 // pred_region
          %s418 = sand.u32 %s27, 1
          %s419 = scalar_lea.sflag [#allocation9], %s418
          %s420 = sand.u32 %s150, 1
          %s421 = smul.addr %s420, 8
          %s422 = scalar_lea.vmem [#allocation10], %s421
          %424 = dma.done %s419, 128
        $region68: #{tpu_custom_call.1} parent=55 // pred_fallthru
          _
      $region56: #{tpu_custom_call.1} parent=5 // pred_fallthru
        _
    $region6: #{tpu_custom_call.1} parent=1 // loop_footer
      %s25 = sadd.s32 1, %s21
    $region7: #{tpu_custom_call.1} parent=1 // loop_footer_branch
      %20 = sbr.rel target = $region3
    $region8: #{tpu_custom_call.1} parent=1 // loop_exit
      _
    %425 = vsyncpa [#allocation3], 1
    %s426 = scalar_lea.sflag [#allocation3], 1
    %427 = vsyncpa %s426, 1
    %428 = vsyncpa [#allocation6], 1
    %429 = vsyncpa [#allocation4], 1
    %s430 = scalar_lea.sflag [#allocation4], 1
    %431 = vsyncpa %s430, 1
    %432 = vsyncpa [#allocation9], 1
    %s433 = scalar_lea.sflag [#allocation9], 1
    %434 = vsyncpa %s433, 1

</llo_original>
